<compile_context>
chip_gen: v7x
topology: tpu7x:2x2x1
jax: 0.10.0
libtpu: 0.0.40
codegen_flags: <defaults>
</compile_context>

<pallas_src>
import functools

import jax
import jax.numpy as jnp
from jax.experimental import pallas as pl
from jax.experimental.pallas import tpu as pltpu


def _vmem_capacity_bytes():
    """Best-effort per-TensorCore VMEM capacity (falls back to 128 MiB)."""
    try:
        info = pltpu.get_tpu_info()
        cap = int(getattr(info, "vmem_capacity_bytes", 0))
        if cap > 0:
            return cap
    except Exception:  # defensive: never let the probe break the kernel
        pass
    return 128 * 1024 * 1024


def _choose_tile(n_rows, d, itemsize, vmem_limit, row_align):
    """Pick (tile_rows, sub_rows) for the row axis.

    tile_rows: rows per DMA block (2 feature inputs x 2 pipeline buffers).
    sub_rows : rows per in-kernel compute chunk (bounds f32 temporaries).
    """
    # Whole problem tiny -> one full-extent block (always a legal block shape,
    # no boundary masking or sublane alignment needed).
    if n_rows * d * 4 <= 2 * 1024 * 1024:
        return n_rows, n_rows
    # Sub-chunk: ~1 MiB per (sub, d) f32 temporary.
    sub = max(row_align, ((1 << 20) // (4 * d)) // row_align * row_align)
    # Per-feature-input DMA tile budget: 2 inputs x 2 pipeline buffers plus the
    # bounded temporaries must fit comfortably inside the scoped-VMEM limit.
    tile_budget = max(512 * 1024, min(8 * 1024 * 1024, vmem_limit // 8))
    tn = max(sub, (tile_budget // (d * itemsize)) // sub * sub)
    # Don't tile past the problem (at most sub-1 rows of masked overhang).
    tn = min(tn, pl.cdiv(n_rows, sub) * sub)
    return tn, sub


def _cos_embed_kernel(x1_ref, x2_ref, y_ref, out_ref, acc_ref, *,
                      margin, eps, n_rows, inv_n, tiles_per_core, sub):
    """One (tn, D) row tile of mean-reduced CosineEmbeddingLoss.

    x1_ref, x2_ref : (tn, D) feature tiles (any float dtype)
    y_ref          : (tn, 1) labels in {+1, -1} (f32)
    out_ref        : (1, 8, 128) per-core partial sum (broadcast-filled)
    acc_ref        : (1, 1) f32 VMEM accumulator, persists across the
                     "arbitrary" row-tile grid axis
    """
    c = pl.program_id(0)          # core-split axis ("parallel")
    i = pl.program_id(1)          # row-tile axis ("arbitrary", carried acc)
    tn = x1_ref.shape[0]

    @pl.when(i == 0)
    def _init():
        acc_ref[...] = jnp.zeros_like(acc_ref)

    # Unclamped global row offset of this tile; rows >= n_rows are masked, so
    # the duplicate tile a clamped index_map may produce contributes zero.
    tile_row0 = (c * tiles_per_core + i) * tn
    n_sub = tn // sub

    def chunk(s, carry):
        r0 = pl.multiple_of(s * sub, sub)
        x1 = x1_ref[pl.ds(r0, sub), :].astype(jnp.float32)
        x2 = x2_ref[pl.ds(r0, sub), :].astype(jnp.float32)
        y = y_ref[pl.ds(r0, sub), :].astype(jnp.float32)

        # Per-row reductions over the feature (lane) axis: VPU mul + XLU sum.
        dot = jnp.sum(x1 * x2, axis=-1, keepdims=True)   # (sub, 1)
        sq1 = jnp.sum(x1 * x1, axis=-1, keepdims=True)
        sq2 = jnp.sum(x2 * x2, axis=-1, keepdims=True)

        # cos = dot / max(||x1||*||x2||, eps) == dot * rsqrt(max(sq1*sq2, eps^2))
        cos = dot * jax.lax.rsqrt(jnp.maximum(sq1 * sq2, eps * eps))

        # y == +1 -> 1 - cos ; y == -1 -> max(0, cos - margin)
        per_row = jnp.where(y > 0, 1.0 - cos, jnp.maximum(cos - margin, 0.0))

        # Mask ragged-tail / duplicate-tile rows (their data is undefined).
        row = tile_row0 + r0 + jax.lax.broadcasted_iota(jnp.int32, (sub, 1), 0)
        per_row = jnp.where(row < n_rows, per_row, 0.0)
        return carry + jnp.sum(per_row, keepdims=True)

    total = jax.lax.fori_loop(0, n_sub, chunk,
                              jnp.zeros((1, 1), jnp.float32),
                              unroll=n_sub <= 8)
    acc_ref[...] += total * inv_n   # mean weight folded in as a constant

    @pl.when(i == pl.num_programs(1) - 1)
    def _finalize():
        out_ref[...] = jnp.broadcast_to(acc_ref[...], out_ref.shape)


def _cosine_embedding_loss_mean(x1, x2, y, *, margin=0.0, eps=1e-8):
    """Pallas-backed mean-reduced CosineEmbeddingLoss for one (x1, x2, y)."""
    assert x1.shape == x2.shape and x1.ndim == 2, (x1.shape, x2.shape)
    n, d = x1.shape
    y = jnp.asarray(y).astype(jnp.float32).reshape(n, 1)   # tiny side-band

    itemsize = jnp.dtype(x1.dtype).itemsize
    row_align = max(8, 32 // max(1, itemsize))   # 8 for f32, 16 for bf16

    vmem_cap = _vmem_capacity_bytes()
    vmem_limit = min(100 * 1024 * 1024, (vmem_cap * 3) // 4)

    tn, sub = _choose_tile(n, d, itemsize, vmem_limit, row_align)
    num_tiles = pl.cdiv(n, tn)

    # 2-way core split only pays on 2-TensorCore chips; 64 MiB per-TC VMEM is
    # the v7x signature (v5e/v6e report 128 MiB and have a single TC).
    core_split = 2 if (num_tiles >= 2 and vmem_cap <= 64 * 1024 * 1024) else 1
    tiles_per_core = pl.cdiv(num_tiles, core_split)

    def row_map(c, i):
        # Clamp so an odd tile count never indexes past the array; the kernel
        # row-mask zeroes the duplicate tile and, because its block index
        # repeats the previous one, the pipeline does not re-DMA it.
        return (jnp.minimum(c * tiles_per_core + i, num_tiles - 1), 0)

    kernel = functools.partial(
        _cos_embed_kernel, margin=float(margin), eps=float(eps), n_rows=n,
        inv_n=1.0 / n, tiles_per_core=tiles_per_core, sub=sub)

    bytes_accessed = 2 * n * d * itemsize + n * 4 + core_split * 8 * 128 * 4

    partials = pl.pallas_call(
        kernel,
        out_shape=jax.ShapeDtypeStruct((core_split, 8, 128), jnp.float32),
        grid_spec=pltpu.PrefetchScalarGridSpec(
            num_scalar_prefetch=0,
            grid=(core_split, tiles_per_core),
            in_specs=[
                pl.BlockSpec((tn, d), row_map),
                pl.BlockSpec((tn, d), row_map),
                pl.BlockSpec((tn, 1), row_map),
            ],
            out_specs=pl.BlockSpec((1, 8, 128), lambda c, i: (c, 0, 0)),
            scratch_shapes=[pltpu.VMEM((1, 1), jnp.float32)],
        ),
        compiler_params=pltpu.CompilerParams(
            dimension_semantics=("parallel", "arbitrary"),
            vmem_limit_bytes=int(vmem_limit),
        ),
        cost_estimate=pl.CostEstimate(
            flops=6 * n * d + 10 * n,
            transcendentals=n,
            bytes_accessed=int(bytes_accessed),
        ),
    )(x1, x2, y)

    # Each core's block is filled with its (identical) partial mean; add them.
    return jnp.sum(partials[:, 0, 0])


def cos_loss(s1_features, s2_features, s1_labels, s2_labels,
             margin=0.0, eps=1e-8):
    """CosLoss.forward: CosineEmbeddingLoss(s1) + CosineEmbeddingLoss(s2)."""
    return (_cosine_embedding_loss_mean(s1_features[0], s1_features[1],
                                        s1_labels, margin=margin, eps=eps)
            + _cosine_embedding_loss_mean(s2_features[0], s2_features[1],
                                          s2_labels, margin=margin, eps=eps))


def _reference(s1_features, s2_features, s1_labels, s2_labels, margin=0.0,
               eps=1e-8):
    def one(x1, x2, y):
        dot = jnp.sum(x1 * x2, axis=-1)
        n1 = jnp.sqrt(jnp.sum(x1 * x1, axis=-1))
        n2 = jnp.sqrt(jnp.sum(x2 * x2, axis=-1))
        cos = dot / jnp.maximum(n1 * n2, eps)
        per = jnp.where(y > 0, 1.0 - cos, jnp.maximum(cos - margin, 0.0))
        return jnp.mean(per)
    return (one(s1_features[0], s1_features[1], s1_labels)
            + one(s2_features[0], s2_features[1], s2_labels))


if __name__ == "__main__":
    key = jax.random.PRNGKey(0)
    k1, k2, k3, k4, k5, k6 = jax.random.split(key, 6)

    # Two pairs of feature batches; deliberately different shapes to show the
    # two-call design needs no concatenation or padding.
    n1, d1 = 8, 32
    n2, d2 = 16, 64

    s1_a = jax.random.normal(k1, (n1, d1), dtype=jnp.float32)
    s1_b = jax.random.normal(k2, (n1, d1), dtype=jnp.float32)
    s2_a = jax.random.normal(k3, (n2, d2), dtype=jnp.float32)
    s2_b = jax.random.normal(k4, (n2, d2), dtype=jnp.float32)

    # labels in {+1, -1}
    s1_y = jnp.where(jax.random.bernoulli(k5, 0.5, (n1,)), 1.0, -1.0)
    s2_y = jnp.where(jax.random.bernoulli(k6, 0.5, (n2,)), 1.0, -1.0)

    loss = cos_loss((s1_a, s1_b), (s2_a, s2_b), s1_y, s2_y)
    loss = jax.block_until_ready(loss)

    ref = _reference((s1_a, s1_b), (s2_a, s2_b), s1_y, s2_y)
    assert jnp.allclose(loss, ref, atol=1e-5, rtol=1e-4), (loss, ref)

    print("KERNEL_OK")
</pallas_src>

<mosaic_0001>
module attributes {stable_mosaic.version = 11 : i64} {
  func.func @_cos_embed_kernel(%arg0: i32, %arg1: i32, %arg2: memref<8x32xf32, #tpu.memory_space<vmem>>, %arg3: memref<8x32xf32, #tpu.memory_space<vmem>>, %arg4: memref<8x1xf32, #tpu.memory_space<vmem>>, %arg5: memref<1x8x128xf32, #tpu.memory_space<vmem>>, %arg6: memref<1x1xf32, #tpu.memory_space<vmem>>) attributes {dimension_semantics = [#tpu.dimension_semantics<parallel>, #tpu.dimension_semantics<arbitrary>], iteration_bounds = array<i64: 1, 1>, scalar_prefetch = 0 : i64, scratch_operands = 1 : i64, tpu.core_type = #tpu.core_type<tc>, window_params = [{transform_indices = @transform_0, window_bounds = array<i64: 8, 32>}, {transform_indices = @transform_1, window_bounds = array<i64: 8, 32>}, {transform_indices = @transform_2, window_bounds = array<i64: 8, 1>}, {transform_indices = @transform_3, window_bounds = array<i64: 1, 8, 128>}]} {
    %c0_i32 = arith.constant 0 : i32
    %0 = arith.cmpi eq, %arg1, %c0_i32 : i32
    %1 = arith.extui %0 : i1 to i32
    %c0_i32_0 = arith.constant 0 : i32
    %2 = arith.cmpi ne, %1, %c0_i32_0 : i32
    scf.if %2 {
      %cst_24 = arith.constant 0.000000e+00 : f32
      %60 = vector.broadcast %cst_24 : f32 to vector<1x1xf32>
      %c0_25 = arith.constant 0 : index
      %c0_26 = arith.constant 0 : index
      %61 = vector.load %arg6[%c0_25, %c0_26] : memref<1x1xf32, #tpu.memory_space<vmem>>, vector<1x1xf32>
      tpu.vector_store %arg6[%c0_25, %c0_26], %60 {strides = array<i32>} : memref<1x1xf32, #tpu.memory_space<vmem>>, vector<1x1xf32>,
    } else {
    }
    %c1_i32 = arith.constant 1 : i32
    %3 = arith.muli %arg0, %c1_i32 : i32
    %4 = arith.addi %3, %arg1 : i32
    %c8_i32 = arith.constant 8 : i32
    %5 = arith.muli %4, %c8_i32 : i32
    %cst = arith.constant 0.000000e+00 : f32
    %6 = vector.broadcast %cst : f32 to vector<1x1xf32>
    %c0_i32_1 = arith.constant 0 : i32
    %c8_i32_2 = arith.constant 8 : i32
    %7 = arith.muli %c0_i32_1, %c8_i32_2 : i32
    %8 = tpu.assume_multiple %7, 8 : i32
    %9 = arith.index_cast %8 : i32 to index
    %c0 = arith.constant 0 : index
    %10 = vector.load %arg2[%9, %c0] : memref<8x32xf32, #tpu.memory_space<vmem>>, vector<8x32xf32>
    %11 = arith.index_cast %8 : i32 to index
    %c0_3 = arith.constant 0 : index
    %12 = vector.load %arg3[%11, %c0_3] : memref<8x32xf32, #tpu.memory_space<vmem>>, vector<8x32xf32>
    %13 = arith.index_cast %8 : i32 to index
    %c0_4 = arith.constant 0 : index
    %14 = vector.load %arg4[%13, %c0_4] : memref<8x1xf32, #tpu.memory_space<vmem>>, vector<8x1xf32>
    %15 = arith.mulf %10, %12 : vector<8x32xf32>
    %cst_5 = arith.constant dense<0.000000e+00> : vector<8xf32>
    %16 = vector.multi_reduction <add>, %15, %cst_5 [1] : vector<8x32xf32> to vector<8xf32>
    %17 = vector.shape_cast %16 : vector<8xf32> to vector<8x1xf32>
    %18 = arith.mulf %10, %10 : vector<8x32xf32>
    %cst_6 = arith.constant dense<0.000000e+00> : vector<8xf32>
    %19 = vector.multi_reduction <add>, %18, %cst_6 [1] : vector<8x32xf32> to vector<8xf32>
    %20 = vector.shape_cast %19 : vector<8xf32> to vector<8x1xf32>
    %21 = arith.mulf %12, %12 : vector<8x32xf32>
    %cst_7 = arith.constant dense<0.000000e+00> : vector<8xf32>
    %22 = vector.multi_reduction <add>, %21, %cst_7 [1] : vector<8x32xf32> to vector<8xf32>
    %23 = vector.shape_cast %22 : vector<8xf32> to vector<8x1xf32>
    %24 = arith.mulf %20, %23 : vector<8x1xf32>
    %cst_8 = arith.constant 1.000000e-16 : f32
    %25 = vector.broadcast %cst_8 : f32 to vector<8x1xf32>
    %26 = arith.maximumf %24, %25 : vector<8x1xf32>
    %27 = math.rsqrt %26 : vector<8x1xf32>
    %28 = arith.mulf %17, %27 : vector<8x1xf32>
    %cst_9 = arith.constant 0.000000e+00 : f32
    %29 = vector.broadcast %cst_9 : f32 to vector<8x1xf32>
    %30 = arith.cmpf ogt, %14, %29 : vector<8x1xf32>
    %cst_10 = arith.constant 1.000000e+00 : f32
    %31 = vector.broadcast %cst_10 : f32 to vector<8x1xf32>
    %32 = arith.subf %31, %28 : vector<8x1xf32>
    %cst_11 = arith.constant 0.000000e+00 : f32
    %33 = vector.broadcast %cst_11 : f32 to vector<8x1xf32>
    %34 = arith.subf %28, %33 : vector<8x1xf32>
    %cst_12 = arith.constant 0.000000e+00 : f32
    %35 = vector.broadcast %cst_12 : f32 to vector<8x1xf32>
    %36 = arith.maximumf %34, %35 : vector<8x1xf32>
    %37 = arith.select %30, %32, %36 : vector<8x1xi1>, vector<8x1xf32>
    %38 = arith.addi %5, %8 : i32
    %39 = tpu.iota {dimensions = array<i32: 0>} : vector<8x1xi32>
    %40 = vector.broadcast %38 : i32 to vector<8x1xi32>
    %41 = arith.addi %40, %39 : vector<8x1xi32>
    %c8_i32_13 = arith.constant 8 : i32
    %42 = vector.broadcast %c8_i32_13 : i32 to vector<8x1xi32>
    %43 = arith.cmpi slt, %41, %42 : vector<8x1xi32>
    %cst_14 = arith.constant 0.000000e+00 : f32
    %44 = vector.broadcast %cst_14 : f32 to vector<8x1xf32>
    %45 = arith.select %43, %37, %44 : vector<8x1xi1>, vector<8x1xf32>
    %46 = vector.shape_cast %45 : vector<8x1xf32> to vector<1x8x1xf32>
    %cst_15 = arith.constant dense<0.000000e+00> : vector<1xf32>
    %47 = vector.multi_reduction <add>, %46, %cst_15 [1, 2] : vector<1x8x1xf32> to vector<1xf32>
    %48 = vector.shape_cast %47 : vector<1xf32> to vector<1x1x1xf32>
    %49 = vector.extract %48[0, 0, 0] : f32 from vector<1x1x1xf32>
    %50 = vector.broadcast %49 : f32 to vector<1x1xf32>
    %51 = arith.addf %6, %50 : vector<1x1xf32>
    %c1_i32_16 = arith.constant 1 : i32
    %c0_17 = arith.constant 0 : index
    %c0_18 = arith.constant 0 : index
    %52 = vector.load %arg6[%c0_17, %c0_18] : memref<1x1xf32, #tpu.memory_space<vmem>>, vector<1x1xf32>
    %cst_19 = arith.constant 1.250000e-01 : f32
    %53 = vector.broadcast %cst_19 : f32 to vector<1x1xf32>
    %54 = arith.mulf %51, %53 : vector<1x1xf32>
    %55 = arith.addf %52, %54 : vector<1x1xf32>
    %c0_20 = arith.constant 0 : index
    %c0_21 = arith.constant 0 : index
    %56 = vector.load %arg6[%c0_20, %c0_21] : memref<1x1xf32, #tpu.memory_space<vmem>>, vector<1x1xf32>
    tpu.vector_store %arg6[%c0_20, %c0_21], %55 {strides = array<i32>} : memref<1x1xf32, #tpu.memory_space<vmem>>, vector<1x1xf32>,
    %c0_i32_22 = arith.constant 0 : i32
    %57 = arith.cmpi eq, %arg1, %c0_i32_22 : i32
    %58 = arith.extui %57 : i1 to i32
    %c0_i32_23 = arith.constant 0 : i32
    %59 = arith.cmpi ne, %58, %c0_i32_23 : i32
    scf.if %59 {
      %c0_24 = arith.constant 0 : index
      %c0_25 = arith.constant 0 : index
      %60 = vector.load %arg6[%c0_24, %c0_25] : memref<1x1xf32, #tpu.memory_space<vmem>>, vector<1x1xf32>
      %61 = vector.shape_cast %60 : vector<1x1xf32> to vector<1x1x1xf32>
      %62 = vector.broadcast %61 : vector<1x1x1xf32> to vector<1x8x128xf32>
      %c0_26 = arith.constant 0 : index
      %c0_27 = arith.constant 0 : index
      %c0_28 = arith.constant 0 : index
      %63 = vector.load %arg5[%c0_26, %c0_27, %c0_28] : memref<1x8x128xf32, #tpu.memory_space<vmem>>, vector<1x8x128xf32>
      tpu.vector_store %arg5[%c0_26, %c0_27, %c0_28], %62 {strides = array<i32>} : memref<1x8x128xf32, #tpu.memory_space<vmem>>, vector<1x8x128xf32>,
    } else {
    }
    return
  }
  func.func @transform_0(%arg0: i32, %arg1: i32) -> (i32, i32) {
    %c1_i32 = arith.constant 1 : i32
    %0 = arith.muli %arg0, %c1_i32 : i32
    %1 = arith.addi %0, %arg1 : i32
    %c0_i32 = arith.constant 0 : i32
    %2 = arith.minsi %1, %c0_i32 : i32
    %c0_i32_0 = arith.constant 0 : i32
    %c0_i32_1 = arith.constant 0 : i32
    return %2, %c0_i32_0 : i32, i32
  }
  func.func @transform_1(%arg0: i32, %arg1: i32) -> (i32, i32) {
    %c1_i32 = arith.constant 1 : i32
    %0 = arith.muli %arg0, %c1_i32 : i32
    %1 = arith.addi %0, %arg1 : i32
    %c0_i32 = arith.constant 0 : i32
    %2 = arith.minsi %1, %c0_i32 : i32
    %c0_i32_0 = arith.constant 0 : i32
    %c0_i32_1 = arith.constant 0 : i32
    return %2, %c0_i32_0 : i32, i32
  }
  func.func @transform_2(%arg0: i32, %arg1: i32) -> (i32, i32) {
    %c1_i32 = arith.constant 1 : i32
    %0 = arith.muli %arg0, %c1_i32 : i32
    %1 = arith.addi %0, %arg1 : i32
    %c0_i32 = arith.constant 0 : i32
    %2 = arith.minsi %1, %c0_i32 : i32
    %c0_i32_0 = arith.constant 0 : i32
    %c0_i32_1 = arith.constant 0 : i32
    return %2, %c0_i32_0 : i32, i32
  }
  func.func @transform_3(%arg0: i32, %arg1: i32) -> (i32, i32, i32) {
    %c0_i32 = arith.constant 0 : i32
    %c0_i32_0 = arith.constant 0 : i32
    %c0_i32_1 = arith.constant 0 : i32
    return %arg0, %c0_i32, %c0_i32_0 : i32, i32, i32
  }
}

</mosaic_0001>

<llo_original>
// kernel: tpu_custom_call.1
$region0: #{tpu_custom_call.1}
  #allocation0 [shape = 'u32[]', space=smem, size = 0x4, offset = 0x4, fixed_abs, tag = 'smem constant byte address 0x4 - core index']
  #allocation1 [shape = 'u32[144,128]{1,0:T(1,128)}', space=vmem, size = 0x12000, scoped, tag = 'internal scratch']
  #allocation2 [shape = 'f32[1,1]{1,0:T(1,128)}', space=vmem, size = 0x200, scoped, tag = 'scratch operand']
  %s0 = inlined_call_operand.hbm [shape: f32[8,32], index: 0, kind: input, shape index: {}]
  %s1 = inlined_call_operand.hbm [shape: f32[8,32], index: 1, kind: input, shape index: {}]
  %s2 = inlined_call_operand.hbm [shape: f32[8,1], index: 2, kind: input, shape index: {}]
  %s3 = inlined_call_operand.hbm [shape: f32[1,8,128], index: 3, kind: output, shape index: {}]
  %s4 = sld [smem:[#allocation0]]
  $region42: #{tpu_custom_call.1} parent=0
    _
  %s6 = ssub.s32 1, %s4
  %s7 = scalar_select 0, %s6, %s4
  $region1: #{tpu_custom_call.1} parent=0
    #allocation3 [shape = 'u8[4096]{0}', space=vmem, size = 0x1000, scoped, tag = 'input window, operand 0, single buffered']
    #allocation4 [shape = 's32[1]{0}', space=sflag, size = 0x4, scoped, tag = 'scoped memory for tpu_custom_call.1']
    #allocation5 [shape = 's32[1]{0}', space=sflag, size = 0x4, scoped, tag = 'scoped memory for tpu_custom_call.1']
    #allocation6 [shape = 'u8[4096]{0}', space=vmem, size = 0x1000, scoped, tag = 'input window, operand 1, single buffered']
    #allocation7 [shape = 's32[1]{0}', space=sflag, size = 0x4, scoped, tag = 'scoped memory for tpu_custom_call.1']
    #allocation8 [shape = 'u8[4096]{0}', space=vmem, size = 0x1000, scoped, tag = 'input window, operand 2, single buffered']
    #allocation9 [shape = 'u8[4096]{0}', space=vmem, size = 0x1000, scoped, tag = 'output window, operand 0, single buffered']
    %8 = vsyncpa [#allocation4], 0
    %9 = vsyncpa [#allocation7], 0
    %10 = vsyncpa [#allocation5], 0
    // Predicated region
    $region2: #{tpu_custom_call.1} parent=1 // pred_check
      _
    $region3: #{tpu_custom_call.1} parent=1 // pred_check_branch
      %12 = sbr.rel (0) target = $region5
    $region4: #{tpu_custom_call.1} parent=1 // pred_region
      %s13 = sadd.s32 0, 0
      %p14 = scmp.lt.s32.totalorder %s13, 0
      %s15 = scalar_select %p14, %s13, 0
      %s17 = ssub.s32 128, 128
      %18 = vsyncadd [#allocation4], %s17
      %s19 = smul.addr %s15, 128
      %s20 = scalar_lea.hbm %s0, %s19
      %s22 = sshll.u32 [#allocation3], 4
      %s23 = int_to_ptr.vmem [resolvable:$true] %s22
      %25 = dma.hbm_to_vmem [thread:$0]  %s20, 128, %s23, [#allocation4]
    $region5: #{tpu_custom_call.1} parent=1 // pred_fallthru
      _
    // Predicated region
    $region6: #{tpu_custom_call.1} parent=1 // pred_check
      _
    $region7: #{tpu_custom_call.1} parent=1 // pred_check_branch
      %27 = sbr.rel (0) target = $region9
    $region8: #{tpu_custom_call.1} parent=1 // pred_region
      %s28 = sadd.s32 0, 0
      %p29 = scmp.lt.s32.totalorder %s28, 0
      %s30 = scalar_select %p29, %s28, 0
      %s32 = ssub.s32 128, 128
      %33 = vsyncadd [#allocation7], %s32
      %s34 = smul.addr %s30, 128
      %s35 = scalar_lea.hbm %s1, %s34
      %s37 = sshll.u32 [#allocation6], 4
      %s38 = int_to_ptr.vmem [resolvable:$true] %s37
      %40 = dma.hbm_to_vmem [thread:$0]  %s35, 128, %s38, [#allocation7]
    $region9: #{tpu_custom_call.1} parent=1 // pred_fallthru
      _
    // Predicated region
    $region10: #{tpu_custom_call.1} parent=1 // pred_check
      _
    $region11: #{tpu_custom_call.1} parent=1 // pred_check_branch
      %42 = sbr.rel (0) target = $region13
    $region12: #{tpu_custom_call.1} parent=1 // pred_region
      %s43 = sadd.s32 0, 0
      %p44 = scmp.lt.s32.totalorder %s43, 0
      %s45 = scalar_select %p44, %s43, 0
      %s47 = ssub.s32 128, 128
      %48 = vsyncadd [#allocation7], %s47
      %s49 = smul.addr %s45, 128
      %s50 = scalar_lea.hbm %s2, %s49
      %s52 = sshll.u32 [#allocation8], 4
      %s53 = int_to_ptr.vmem [resolvable:$true] %s52
      %55 = dma.hbm_to_vmem [thread:$0]  %s50, 128, %s53, [#allocation7]
    $region13: #{tpu_custom_call.1} parent=1 // pred_fallthru
      _
    // Predicated region
    $region14: #{tpu_custom_call.1} parent=1 // pred_check
      _
    $region15: #{tpu_custom_call.1} parent=1 // pred_check_branch
      %57 = sbr.rel (0) target = $region17
    $region16: #{tpu_custom_call.1} parent=1 // pred_region
      %58 = dma.done [#allocation4], 128
    $region17: #{tpu_custom_call.1} parent=1 // pred_fallthru
      _
    // Predicated region
    $region18: #{tpu_custom_call.1} parent=1 // pred_check
      _
    $region19: #{tpu_custom_call.1} parent=1 // pred_check_branch
      %60 = sbr.rel (0) target = $region21
    $region20: #{tpu_custom_call.1} parent=1 // pred_region
      %61 = dma.done [#allocation7], 128
    $region21: #{tpu_custom_call.1} parent=1 // pred_fallthru
      _
    // Predicated region
    $region22: #{tpu_custom_call.1} parent=1 // pred_check
      _
    $region23: #{tpu_custom_call.1} parent=1 // pred_check_branch
      %63 = sbr.rel (0) target = $region25
    $region24: #{tpu_custom_call.1} parent=1 // pred_region
      %64 = dma.done [#allocation7], 128
    $region25: #{tpu_custom_call.1} parent=1 // pred_fallthru
      _
    %s65 = sadd.s32 0, 0
    %p66 = scmp.lt.s32.totalorder %s65, 0
    %s67 = scalar_select %p66, %s65, 0
    %s68 = sadd.s32 0, 0
    %p69 = scmp.lt.s32.totalorder %s68, 0
    %s70 = scalar_select %p69, %s68, 0
    %s71 = sadd.s32 0, 0
    %p72 = scmp.lt.s32.totalorder %s71, 0
    %s73 = scalar_select %p72, %s71, 0
    %p74 = scmp.eq.s32.totalorder 0, 0
    // Predicated region
    $region26: #{tpu_custom_call.1} parent=1 // pred_check
      %p75 = pneg %p74
    $region27: #{tpu_custom_call.1} parent=1 // pred_check_branch
      %77 = sbr.rel (%p75) target = $region29
    $region28: #{tpu_custom_call.1} parent=1 // pred_region
      %vm78 = vcmask 0
      %79 = vst.msk [vmem:[#allocation2] sm:$0x1] %vm78, 0.0
    $region29: #{tpu_custom_call.1} parent=1 // pred_fallthru
      _
    %s80 = sadd.s32 0, 0
    %s81 = smul.u32 %s80, 8
    %v82 = vld [vmem:[#allocation3] sm:$0xff]
    %v83 = vld [vmem:[#allocation6] sm:$0xff]
    %v84 = vld [vmem:[#allocation8] sm:$0xff]
    %v85 = vmul.f32 %v82, %v83
    %vm86 = vcmask 261120
    %v87 = vsel %vm86, %v85, 0.0
    %88 = vadd.xlane.f32.xlu0 %v87
    %v89 = vpop.xlane.xlu0 %88
    %v90 = vmul.f32 %v82, %v82
    %v91 = vsel %vm86, %v90, 0.0
    %92 = vadd.xlane.f32.xlu0 %v91
    %v93 = vpop.xlane.xlu0 %92
    %v94 = vmul.f32 %v83, %v83
    %v95 = vsel %vm86, %v94, 0.0
    %96 = vadd.xlane.f32.xlu0 %v95
    %v97 = vpop.xlane.xlu0 %96
    %v98 = vmul.f32 %v93, %v97
    %v99 = vmax.f32 %v98, 1e-16
    %v100 = vrsqrt.pop %v99
    %v101 = vmul.f32 %v89, %v100
    %vm102 = vcmp.gt.f32.partialorder %v84, 0.0
    %v103 = vsub.f32 1.0, %v101
    %v104 = vmax.f32 %v101, 0.0
    %v105 = vsel %vm102, %v103, %v104
    %s106 = sadd.s32 %s81, 0
    %v107 = vlaneseq
    %v108 = vshrl.u32 %v107, 7
    %v109 = vstv %s106
    %v110 = vadd.s32 %v109, %v108
    %vm111 = vcmp.lt.s32.totalorder %v110, 8
    %v112 = vsel %vm111, %v105, 0.0
    %vm113 = vcmask 7168
    %v114 = vsel %vm113, %v112, 0.0
    %115 = vadd.xlane.f32.xlu0 %v114
    %v116 = vpop.xlane.xlu0 %115
    %v117 = vrot.slane %v116, 4
    %v118 = vadd.f32 %v116, %v117
    %v119 = vrot.slane %v118, 2
    %v120 = vadd.f32 %v118, %v119
    %v121 = vrot.slane %v120, 1
    %v122 = vadd.f32 %v120, %v121
    %s123 = vtos %v122
    %v124 = vstv %s123
    %v125 = vadd.f32 %v124, 0.0
    %v126 = vld [vmem:[#allocation2] sm:$0x1]
    %v127 = vmul.f32 %v125, 0.125
    %v128 = vadd.f32 %v126, %v127
    %vm129 = vcmask 0
    %130 = vst.msk [vmem:[#allocation2] sm:$0x1] %vm129, %v128
    // Predicated region
    $region30: #{tpu_custom_call.1} parent=1 // pred_check
      %p131 = pneg %p74
    $region31: #{tpu_custom_call.1} parent=1 // pred_check_branch
      %133 = sbr.rel (%p131) target = $region33
    $region32: #{tpu_custom_call.1} parent=1 // pred_region
      %v134 = vld [vmem:[#allocation2] sm:$0x1]
      %v136 = vlaneseq
      %v137 = vshrl.u32 %v136, 7
      %v138 = vsub.s32 0, %v137
      %v139 = vrot.slane %v134, %v138
      %140 = vset.pattern.permute.xlu0 0
      %141 = vperm.xlu0 %140, %v139
      %v142 = vpop.permute.xlu0 %141
      %144 = vst [vmem:[#allocation9] sm:$0xff] %v142
    $region33: #{tpu_custom_call.1} parent=1 // pred_fallthru
      _
    // Predicated region
    $region34: #{tpu_custom_call.1} parent=1 // pred_check
      _
    $region35: #{tpu_custom_call.1} parent=1 // pred_check_branch
      %146 = sbr.rel (0) target = $region37
    $region36: #{tpu_custom_call.1} parent=1 // pred_region
      %s148 = ssub.s32 128, 128
      %149 = vsyncadd [#allocation5], %s148
      %s151 = sshll.u32 [#allocation9], 4
      %s152 = int_to_ptr.vmem [resolvable:$true] %s151
      %154 = dma.vmem_to_hbm [thread:$0]  %s152, 128, %s3, [#allocation5]
    $region37: #{tpu_custom_call.1} parent=1 // pred_fallthru
      _
    // Predicated region
    $region38: #{tpu_custom_call.1} parent=1 // pred_check
      _
    $region39: #{tpu_custom_call.1} parent=1 // pred_check_branch
      %156 = sbr.rel (0) target = $region41
    $region40: #{tpu_custom_call.1} parent=1 // pred_region
      %157 = dma.done [#allocation5], 128
    $region41: #{tpu_custom_call.1} parent=1 // pred_fallthru
      _
    %158 = vsyncpa [#allocation4], 1
    %159 = vsyncpa [#allocation7], 1
    %160 = vsyncpa [#allocation5], 1

</llo_original>
